<compile_context>
chip_gen: v7x
topology: tpu7x:2x2x1
jax: 0.10.0
libtpu: 0.0.40
codegen_flags: <defaults>
</compile_context>

<pallas_src>
import functools

import jax
import jax.numpy as jnp
from jax.experimental import pallas as pl
from jax.experimental.pallas import tpu as pltpu


def _rmsnorm_kernel(x_ref, s_ref, o_ref, *, eps, inv_d):
    # x_ref: (br, D) tile;  s_ref: (1, D) scale already in output dtype.
    x = x_ref[...].astype(jnp.float32)                       # f32 math always
    ms = jnp.sum(x * x, axis=-1, keepdims=True) * inv_d      # (br, 1)
    inv = jax.lax.rsqrt(ms + eps)                            # EUP slot, ~free
    xn = (x * inv).astype(o_ref.dtype)                       # .type_as(x)
    o_ref[...] = xn * s_ref[...]                             # * (1 + weight)


def _choose_tiling(n_rows, d, in_bytes, out_bytes):
    """Pick (block_rows, vmem_limit_bytes) from D, dtype and VMEM capacity."""
    try:
        vmem_cap = int(pltpu.get_tpu_info().vmem_capacity_bytes)
    except Exception:  # pragma: no cover - conservative (v7x-sized) fallback
        vmem_cap = 64 << 20

    # Scoped VMEM limit: ~75% of physical, capped at 100 MiB, floor 32 MiB.
    vmem_limit = int(min(vmem_cap * 3 // 4, 100 << 20))
    vmem_limit = max(vmem_limit, 32 << 20)

    # Per-row VMEM bytes of the working set: double-buffered input + output
    # tiles plus ~3 f32 intermediates (x.astype(f32), x*x, x*inv).
    per_row = d * (2 * in_bytes + 2 * out_bytes + 3 * 4)
    budget = int(vmem_limit * 0.6)                       # leave headroom
    br_vmem = max(8, (budget // per_row) // 8 * 8)

    # Target ~4 MiB streamed per grid step to amortize ~0.35 us/step overhead.
    target_tile = 4 << 20
    br_tile = max(8, (target_tile // (d * in_bytes)) // 8 * 8)

    br = min(br_vmem, br_tile)

    # Prefer >= 8 grid steps (2 TCs x pipeline depth) when that still leaves
    # tiles of at least ~1 MiB of streamed data.
    rows8 = ((n_rows + 7) // 8) * 8
    br_grid8 = max(8, ((rows8 + 7) // 8 + 7) // 8 * 8)   # ceil(N/8) -> mult of 8
    if br_grid8 * d * in_bytes >= (1 << 20):
        br = min(br, br_grid8)

    # Never allocate a block larger than the (row-padded) problem itself.
    br = max(8, min(br, rows8))
    return br, vmem_limit


def rmsnorm(x, weight, *, eps=1e-6, add_unit_offset=True):
    """x: (..., D), weight: (D,) -> same shape/dtype as x."""
    orig_shape = x.shape
    D = orig_shape[-1]
    N = 1
    for s in orig_shape[:-1]:
        N *= s
    x2d = x.reshape(N, D)

    # Hoist the unit offset and the dtype cast to the host: one tiny op instead
    # of per-grid-step work inside the kernel.
    # TODO(synk): PyTorch mixed-dtype promotion (bf16 x with f32 weight giving
    # an f32 output) is not reproduced; the output keeps x.dtype.
    scale = (1.0 + weight) if add_unit_offset else weight
    scale = scale.reshape(1, D).astype(x.dtype)

    in_bytes = jnp.dtype(x.dtype).itemsize
    br, vmem_limit = _choose_tiling(N, D, in_bytes, in_bytes)
    grid = pl.cdiv(N, br)

    out = pl.pallas_call(
        functools.partial(_rmsnorm_kernel, eps=eps, inv_d=1.0 / D),
        out_shape=jax.ShapeDtypeStruct((N, D), x.dtype),
        grid_spec=pltpu.PrefetchScalarGridSpec(
            num_scalar_prefetch=0,
            grid=(grid,),
            in_specs=[
                pl.BlockSpec((br, D), lambda i: (i, 0)),   # x rows (lane-dense D)
                pl.BlockSpec((1, D), lambda i: (0, 0)),    # scale, resident
            ],
            out_specs=pl.BlockSpec((br, D), lambda i: (i, 0)),
        ),
        compiler_params=pltpu.CompilerParams(
            dimension_semantics=("parallel",),
            vmem_limit_bytes=vmem_limit,
        ),
        cost_estimate=pl.CostEstimate(
            flops=4 * N * D,
            transcendentals=N,
            bytes_accessed=2 * N * D * in_bytes + D * in_bytes,
        ),
    )(x2d, scale)

    return out.reshape(orig_shape)


def _reference(x, weight, *, eps=1e-6, add_unit_offset=True):
    xf = x.astype(jnp.float32)
    n = xf * jax.lax.rsqrt(jnp.mean(xf * xf, axis=-1, keepdims=True) + eps)
    n = n.astype(x.dtype)
    scale = (1.0 + weight) if add_unit_offset else weight
    return n * scale.astype(x.dtype)


if __name__ == "__main__":
    # Small but lane-aligned config: batch=2, seq=8, hidden=128.
    B, T, D = 2, 8, 128
    root = jax.random.PRNGKey(0)
    kx, kw = jax.random.split(root)
    x = jax.random.normal(kx, (B, T, D), jnp.float32)
    weight = 0.1 * jax.random.normal(kw, (D,), jnp.float32)

    out = rmsnorm(x, weight, eps=1e-6, add_unit_offset=True)
    out = jax.block_until_ready(out)

    ref = _reference(x, weight, eps=1e-6, add_unit_offset=True)
    assert jnp.allclose(out, ref, atol=1e-5, rtol=1e-5), "mismatch vs reference"

    # Also exercise a ragged row count (N not a multiple of the block) to
    # verify the boundary-block path (no host pad / slice).
    B2, T2, D2 = 3, 7, 128
    kx2 = jax.random.PRNGKey(1)
    x2 = jax.random.normal(kx2, (B2, T2, D2), jnp.float32)
    w2 = jnp.ones((D2,), jnp.float32) * 0.05
    out2 = jax.block_until_ready(rmsnorm(x2, w2))
    ref2 = _reference(x2, w2)
    assert jnp.allclose(out2, ref2, atol=1e-5, rtol=1e-5), "ragged mismatch"

    print("KERNEL_OK")
</pallas_src>

<mosaic_0001>
module attributes {stable_mosaic.version = 11 : i64} {
  func.func @_rmsnorm_kernel(%arg0: i32, %arg1: memref<16x128xf32, #tpu.memory_space<vmem>>, %arg2: memref<1x128xf32, #tpu.memory_space<vmem>>, %arg3: memref<16x128xf32, #tpu.memory_space<vmem>>) attributes {dimension_semantics = [#tpu.dimension_semantics<parallel>], iteration_bounds = array<i64: 1>, scalar_prefetch = 0 : i64, scratch_operands = 0 : i64, tpu.core_type = #tpu.core_type<tc>, window_params = [{transform_indices = @transform_0, window_bounds = array<i64: 16, 128>}, {pipeline_mode = #tpu.pipeline_mode<synchronous>, transform_indices = @transform_1, window_bounds = array<i64: 1, 128>}, {transform_indices = @transform_2, window_bounds = array<i64: 16, 128>}]} {
    %c0 = arith.constant 0 : index
    %c0_0 = arith.constant 0 : index
    %0 = vector.load %arg1[%c0, %c0_0] : memref<16x128xf32, #tpu.memory_space<vmem>>, vector<16x128xf32>
    %1 = arith.mulf %0, %0 : vector<16x128xf32>
    %cst = arith.constant dense<0.000000e+00> : vector<16xf32>
    %2 = vector.multi_reduction <add>, %1, %cst [1] : vector<16x128xf32> to vector<16xf32>
    %3 = vector.shape_cast %2 : vector<16xf32> to vector<16x1xf32>
    %cst_1 = arith.constant 7.812500e-03 : f32
    %4 = vector.broadcast %cst_1 : f32 to vector<16x1xf32>
    %5 = arith.mulf %3, %4 : vector<16x1xf32>
    %cst_2 = arith.constant 9.99999997E-7 : f32
    %6 = vector.broadcast %cst_2 : f32 to vector<16x1xf32>
    %7 = arith.addf %5, %6 : vector<16x1xf32>
    %8 = math.rsqrt %7 : vector<16x1xf32>
    %9 = vector.broadcast %8 : vector<16x1xf32> to vector<16x128xf32>
    %10 = arith.mulf %0, %9 : vector<16x128xf32>
    %c0_3 = arith.constant 0 : index
    %c0_4 = arith.constant 0 : index
    %11 = vector.load %arg2[%c0_3, %c0_4] : memref<1x128xf32, #tpu.memory_space<vmem>>, vector<1x128xf32>
    %12 = vector.broadcast %11 : vector<1x128xf32> to vector<16x128xf32>
    %13 = arith.mulf %10, %12 : vector<16x128xf32>
    %c0_5 = arith.constant 0 : index
    %c0_6 = arith.constant 0 : index
    %14 = vector.load %arg3[%c0_5, %c0_6] : memref<16x128xf32, #tpu.memory_space<vmem>>, vector<16x128xf32>
    tpu.vector_store %arg3[%c0_5, %c0_6], %13 {strides = array<i32>} : memref<16x128xf32, #tpu.memory_space<vmem>>, vector<16x128xf32>,
    return
  }
  func.func @transform_0(%arg0: i32) -> (i32, i32) {
    %c0_i32 = arith.constant 0 : i32
    %c0_i32_0 = arith.constant 0 : i32
    return %arg0, %c0_i32 : i32, i32
  }
  func.func @transform_1(%arg0: i32) -> (i32, i32) {
    %c0_i32 = arith.constant 0 : i32
    %c0_i32_0 = arith.constant 0 : i32
    %c0_i32_1 = arith.constant 0 : i32
    return %c0_i32, %c0_i32_0 : i32, i32
  }
  func.func @transform_2(%arg0: i32) -> (i32, i32) {
    %c0_i32 = arith.constant 0 : i32
    %c0_i32_0 = arith.constant 0 : i32
    return %arg0, %c0_i32 : i32, i32
  }
}

</mosaic_0001>

<llo_original>
// kernel: tpu_custom_call.1
$region0: #{tpu_custom_call.1}
  #allocation0 [shape = 'u32[]', space=smem, size = 0x4, offset = 0x4, fixed_abs, tag = 'smem constant byte address 0x4 - core index']
  #allocation1 [shape = 'u32[144,128]{1,0:T(1,128)}', space=vmem, size = 0x12000, scoped, tag = 'internal scratch']
  %s0 = inlined_call_operand.hbm [shape: f32[16,128], index: 0, kind: input, shape index: {}]
  %s1 = inlined_call_operand.vmem [shape: f32[1,128], index: 1, kind: input, shape index: {}]
  %s2 = inlined_call_operand.hbm [shape: f32[16,128], index: 2, kind: output, shape index: {}]
  %s3 = sld [smem:[#allocation0]]
  $region22: #{tpu_custom_call.1} parent=0
    _
  %s5 = ssub.s32 1, %s3
  %s6 = scalar_select 0, %s5, %s3
  $region1: #{tpu_custom_call.1} parent=0
    #allocation2 [shape = 'u8[8192]{0}', space=vmem, size = 0x2000, scoped, tag = 'input window, operand 0, single buffered']
    #allocation3 [shape = 's32[1]{0}', space=sflag, size = 0x4, scoped, tag = 'scoped memory for tpu_custom_call.1']
    #allocation4 [shape = 's32[1]{0}', space=sflag, size = 0x4, scoped, tag = 'scoped memory for tpu_custom_call.1']
    #allocation5 [shape = 'u8[8192]{0}', space=vmem, size = 0x2000, scoped, tag = 'output window, operand 0, single buffered']
    %7 = vsyncpa [#allocation3], 0
    %8 = vsyncpa [#allocation4], 0
    // Predicated region
    $region2: #{tpu_custom_call.1} parent=1 // pred_check
      _
    $region3: #{tpu_custom_call.1} parent=1 // pred_check_branch
      %10 = sbr.rel (0) target = $region5
    $region4: #{tpu_custom_call.1} parent=1 // pred_region
      %s12 = ssub.s32 256, 256
      %13 = vsyncadd [#allocation3], %s12
      %s14 = sshll.u32 [#allocation2], 4
      %s15 = int_to_ptr.vmem [resolvable:$true] %s14
      %20 = dma.hbm_to_vmem [thread:$0]  %s0, 256, %s15, [#allocation3], 128, 128, 8
    $region5: #{tpu_custom_call.1} parent=1 // pred_fallthru
      _
    // Predicated region
    $region6: #{tpu_custom_call.1} parent=1 // pred_check
      _
    $region7: #{tpu_custom_call.1} parent=1 // pred_check_branch
      %22 = sbr.rel (0) target = $region9
    $region8: #{tpu_custom_call.1} parent=1 // pred_region
      _
    $region9: #{tpu_custom_call.1} parent=1 // pred_fallthru
      _
    // Predicated region
    $region10: #{tpu_custom_call.1} parent=1 // pred_check
      _
    $region11: #{tpu_custom_call.1} parent=1 // pred_check_branch
      %24 = sbr.rel (0) target = $region13
    $region12: #{tpu_custom_call.1} parent=1 // pred_region
      %25 = dma.done [#allocation3], 256
    $region13: #{tpu_custom_call.1} parent=1 // pred_fallthru
      _
    %v26 = vld [vmem:[#allocation2] sm:$0xff]
    %v27 = vld [vmem:[#allocation2 + $0x8] sm:$0xff]
    %v28 = vmul.f32 %v26, %v26
    %v29 = vmul.f32 %v27, %v27
    %30 = vadd.xlane.f32.xlu0 %v28
    %v31 = vpop.xlane.xlu0 %30
    %32 = vadd.xlane.f32.xlu0 %v29
    %v33 = vpop.xlane.xlu0 %32
    %v34 = vmul.f32 %v31, 0.0078125
    %v35 = vmul.f32 %v33, 0.0078125
    %v36 = vadd.f32 %v34, 1e-06
    %v37 = vadd.f32 %v35, 1e-06
    %v38 = vrsqrt.pop %v36
    %v39 = vrsqrt.pop %v37
    %v40 = vmul.f32 %v26, %v38
    %v41 = vmul.f32 %v27, %v39
    %v42 = vld [vmem:[%s1] sm:$0x1]
    %v44 = vlaneseq
    %v45 = vshrl.u32 %v44, 7
    %v46 = vsub.s32 0, %v45
    %v47 = vrot.slane %v42, %v46
    %v49 = vmul.f32 %v40, %v47
    %v50 = vmul.f32 %v41, %v47
    %51 = vst [vmem:[#allocation5] sm:$0xff] %v49
    %52 = vst [vmem:[#allocation5 + $0x8] sm:$0xff] %v50
    // Predicated region
    $region14: #{tpu_custom_call.1} parent=1 // pred_check
      _
    $region15: #{tpu_custom_call.1} parent=1 // pred_check_branch
      %54 = sbr.rel (0) target = $region17
    $region16: #{tpu_custom_call.1} parent=1 // pred_region
      %s56 = ssub.s32 256, 256
      %57 = vsyncadd [#allocation4], %s56
      %s58 = sshll.u32 [#allocation5], 4
      %s59 = int_to_ptr.vmem [resolvable:$true] %s58
      %64 = dma.vmem_to_hbm [thread:$0]  %s59, 256, %s2, [#allocation4], 128, 128, 8
    $region17: #{tpu_custom_call.1} parent=1 // pred_fallthru
      _
    // Predicated region
    $region18: #{tpu_custom_call.1} parent=1 // pred_check
      _
    $region19: #{tpu_custom_call.1} parent=1 // pred_check_branch
      %66 = sbr.rel (0) target = $region21
    $region20: #{tpu_custom_call.1} parent=1 // pred_region
      %67 = dma.done [#allocation4], 256
    $region21: #{tpu_custom_call.1} parent=1 // pred_fallthru
      _
    %68 = vsyncpa [#allocation3], 1
    %69 = vsyncpa [#allocation4], 1

</llo_original>
